<compile_context>
chip_gen: v7x
topology: tpu7x:2x2x1
jax: 0.10.0
libtpu: 0.0.40
codegen_flags: <defaults>
</compile_context>

<pallas_src>
import functools

import jax
import jax.numpy as jnp
from jax.experimental import pallas as pl
from jax.experimental.pallas import tpu as pltpu

EVENT_RESOLUTION = 8
MODEL_DIM = 128
NUM_LAYERS = 5
OUT_DIM = EVENT_RESOLUTION * 4  # 32
OUT_PAD = 128                   # lane-dense padded output width


def _mlp_kernel(x_ref, wh_ref, bh_ref, wo_ref, bo_ref, out_ref):
    """Full LinearOutputStack forward for one tile of rows.

    x_ref  : (tm, 128)    bf16 input rows
    wh_ref : (5, 128, 128) bf16 hidden weights, (in_dim, out_dim) layout
    bh_ref : (5, 128)      f32 hidden biases
    wo_ref : (128, 128)    bf16 output weight, zero-padded past column 32
    bo_ref : (1, 128)      f32 output bias, zero-padded past column 32
    out_ref: (tm, 128)     f32 sigmoid(MLP(x)); columns >= 32 are dummies (0.5)
    """
    h = x_ref[...]  # bf16
    for l in range(NUM_LAYERS):  # static unroll, 5 layers
        a = jnp.dot(h, wh_ref[l], preferred_element_type=jnp.float32)
        a = a + bh_ref[l][None, :]           # f32 elementwise
        a = jnp.maximum(a, 0.2 * a)          # LeakyReLU(0.2), f32
        h = a.astype(jnp.bfloat16)           # bf16 back into the MXU
    y = jnp.dot(h, wo_ref[...], preferred_element_type=jnp.float32) + bo_ref[...]
    out_ref[...] = jax.nn.sigmoid(y)


def _row_tile(M, tm):
    """Pick the effective row tile: multiple of 8, no larger than needed, and
    (when M is big enough) leaves >= 2 grid steps for v7x's 2 TensorCores."""
    tm = max(8, (tm // 8) * 8)
    M8 = ((M + 7) // 8) * 8
    tm = min(tm, M8)
    while tm > 256 and ((M8 + tm - 1) // tm) < 2:
        tm = ((tm // 2) // 8) * 8
    return tm


@functools.partial(jax.jit, static_argnames=("tm",))
def synth_param_generator(x, wh, bh, wo, bo, *, tm=1024):
    """x: (B, T, MODEL_DIM) -> (delays, dampings, filter_sizes, impulse),
    each (B, T, EVENT_RESOLUTION)."""
    B, T, D = x.shape
    assert D == MODEL_DIM
    M = B * T
    tm_eff = _row_tile(M, tm)
    M_pad = ((M + tm_eff - 1) // tm_eff) * tm_eff

    # bf16 input stream (halves HBM read bytes); pad rows to the tile multiple.
    x2 = x.reshape(M, D).astype(jnp.bfloat16)
    if M_pad != M:
        x2 = jnp.pad(x2, ((0, M_pad - M), (0, 0)))

    # bf16 weights for the MXU; f32 biases for the VPU. Pad the output
    # projection to 128 lanes (zeros) so stores are unmasked full-lane vst.
    wh_b = wh.astype(jnp.bfloat16)
    bh_f = bh.astype(jnp.float32)
    wo_p = jnp.pad(wo, ((0, 0), (0, OUT_PAD - OUT_DIM))).astype(jnp.bfloat16)
    bo_p = jnp.pad(bo, ((0, 0), (0, OUT_PAD - OUT_DIM))).astype(jnp.float32)

    grid = (M_pad // tm_eff,)

    flops = 2 * M_pad * MODEL_DIM * (NUM_LAYERS * MODEL_DIM + OUT_PAD)
    bytes_accessed = (M_pad * MODEL_DIM * 2          # x (bf16)
                      + M_pad * OUT_PAD * 4          # out (f32)
                      + wh_b.size * 2 + bh_f.size * 4
                      + wo_p.size * 2 + bo_p.size * 4)

    out = pl.pallas_call(
        _mlp_kernel,
        out_shape=jax.ShapeDtypeStruct((M_pad, OUT_PAD), jnp.float32),
        grid_spec=pltpu.PrefetchScalarGridSpec(
            num_scalar_prefetch=0,
            grid=grid,
            in_specs=[
                pl.BlockSpec((tm_eff, D), lambda i: (i, 0)),
                pl.BlockSpec((NUM_LAYERS, D, D), lambda i: (0, 0, 0)),
                pl.BlockSpec((NUM_LAYERS, D), lambda i: (0, 0)),
                pl.BlockSpec((D, OUT_PAD), lambda i: (0, 0)),
                pl.BlockSpec((1, OUT_PAD), lambda i: (0, 0)),
            ],
            out_specs=pl.BlockSpec((tm_eff, OUT_PAD), lambda i: (i, 0)),
        ),
        compiler_params=pltpu.CompilerParams(
            dimension_semantics=("parallel",)),
        cost_estimate=pl.CostEstimate(
            flops=flops,
            transcendentals=M_pad * OUT_PAD,
            bytes_accessed=bytes_accessed),
    )(x2, wh_b, bh_f, wo_p, bo_p)

    # Drop padded rows and the 96 padded (sigmoid(0)=0.5) output columns.
    out = out[:M, :OUT_DIM].reshape(B, T, OUT_DIM)
    delays = out[:, :, :EVENT_RESOLUTION]
    dampings = out[:, :, EVENT_RESOLUTION:EVENT_RESOLUTION * 2]
    filter_sizes = out[:, :, EVENT_RESOLUTION * 2:EVENT_RESOLUTION * 3]
    impulse = out[:, :, EVENT_RESOLUTION * 3:]
    return delays, dampings, filter_sizes, impulse


def init_params(key):
    """Deterministic init mimicking nn.Linear default (U(-1/sqrt(fan_in), +))."""
    ks = jax.random.split(key, 2 * NUM_LAYERS + 2)
    bound_h = 1.0 / jnp.sqrt(jnp.float32(MODEL_DIM))
    wh = jnp.stack([
        jax.random.uniform(ks[i], (MODEL_DIM, MODEL_DIM), jnp.float32,
                           -bound_h, bound_h)
        for i in range(NUM_LAYERS)
    ])
    bh = jnp.stack([
        jax.random.uniform(ks[NUM_LAYERS + i], (MODEL_DIM,), jnp.float32,
                           -bound_h, bound_h)
        for i in range(NUM_LAYERS)
    ])
    wo = jax.random.uniform(ks[-2], (MODEL_DIM, OUT_DIM), jnp.float32,
                            -bound_h, bound_h)
    bo = jax.random.uniform(ks[-1], (1, OUT_DIM), jnp.float32,
                            -bound_h, bound_h)
    return wh, bh, wo, bo


def _reference(x, wh, bh, wo, bo):
    h = x.astype(jnp.float32)
    for l in range(NUM_LAYERS):
        h = h @ wh[l] + bh[l]
        h = jnp.where(h > 0, h, 0.2 * h)
    y = jax.nn.sigmoid(h @ wo + bo)
    return (y[..., :8], y[..., 8:16], y[..., 16:24], y[..., 24:])


if __name__ == "__main__":
    key = jax.random.PRNGKey(0)
    k_x, k_p = jax.random.split(key)

    B, T = 2, 8  # small: batch=2, seq=8, hidden=model_dim=128
    x = jax.random.normal(k_x, (B, T, MODEL_DIM), dtype=jnp.float32)
    wh, bh, wo, bo = init_params(k_p)

    outs = synth_param_generator(x, wh, bh, wo, bo)
    outs = jax.block_until_ready(outs)

    refs = _reference(x, wh, bh, wo, bo)
    for o, r in zip(outs, refs):
        assert o.shape == (B, T, EVENT_RESOLUTION), o.shape
        # bf16-in / f32-accumulate matmuls vs f32 reference: small rounding drift.
        assert jnp.max(jnp.abs(o - r)) < 3e-2

    print("KERNEL_OK")
</pallas_src>

<mosaic_0001>
module attributes {stable_mosaic.version = 11 : i64} {
  func.func @_mlp_kernel(%arg0: i32, %arg1: memref<16x128xbf16, #tpu.memory_space<vmem>>, %arg2: memref<5x128x128xbf16, #tpu.memory_space<vmem>>, %arg3: memref<5x128xf32, #tpu.memory_space<vmem>>, %arg4: memref<128x128xbf16, #tpu.memory_space<vmem>>, %arg5: memref<1x128xf32, #tpu.memory_space<vmem>>, %arg6: memref<16x128xf32, #tpu.memory_space<vmem>>) attributes {dimension_semantics = [#tpu.dimension_semantics<parallel>], iteration_bounds = array<i64: 1>, scalar_prefetch = 0 : i64, scratch_operands = 0 : i64, tpu.core_type = #tpu.core_type<tc>, window_params = [{transform_indices = @transform_0, window_bounds = array<i64: 16, 128>}, {pipeline_mode = #tpu.pipeline_mode<synchronous>, transform_indices = @transform_1, window_bounds = array<i64: 5, 128, 128>}, {pipeline_mode = #tpu.pipeline_mode<synchronous>, transform_indices = @transform_2, window_bounds = array<i64: 5, 128>}, {pipeline_mode = #tpu.pipeline_mode<synchronous>, transform_indices = @transform_3, window_bounds = array<i64: 128, 128>}, {pipeline_mode = #tpu.pipeline_mode<synchronous>, transform_indices = @transform_4, window_bounds = array<i64: 1, 128>}, {transform_indices = @transform_5, window_bounds = array<i64: 16, 128>}]} {
    %c0 = arith.constant 0 : index
    %c0_0 = arith.constant 0 : index
    %0 = vector.load %arg1[%c0, %c0_0] : memref<16x128xbf16, #tpu.memory_space<vmem>>, vector<16x128xbf16>
    %c0_1 = arith.constant 0 : index
    %c0_2 = arith.constant 0 : index
    %c0_3 = arith.constant 0 : index
    %1 = vector.load %arg2[%c0_1, %c0_2, %c0_3] : memref<5x128x128xbf16, #tpu.memory_space<vmem>>, vector<1x128x128xbf16>
    %2 = vector.shape_cast %1 : vector<1x128x128xbf16> to vector<128x128xbf16>
    %cst = arith.constant dense<0.000000e+00> : vector<16x128xf32>
    %3 = tpu.matmul %0, %2, %cst {dimension_numbers = #tpu.dot_dimension_numbers<[1], [0], [0], [1], [0, 0, 1, 1], [], []>} : vector<16x128xbf16>, vector<128x128xbf16>, vector<16x128xf32> -> vector<16x128xf32>
    %c0_4 = arith.constant 0 : index
    %c0_5 = arith.constant 0 : index
    %4 = vector.load %arg3[%c0_4, %c0_5] : memref<5x128xf32, #tpu.memory_space<vmem>>, vector<1x128xf32>
    %5 = vector.shape_cast %4 : vector<1x128xf32> to vector<128xf32>
    %6 = vector.shape_cast %5 : vector<128xf32> to vector<1x128xf32>
    %7 = vector.broadcast %6 : vector<1x128xf32> to vector<16x128xf32>
    %8 = arith.addf %3, %7 : vector<16x128xf32>
    %cst_6 = arith.constant 2.000000e-01 : f32
    %9 = vector.broadcast %cst_6 : f32 to vector<16x128xf32>
    %10 = arith.mulf %9, %8 : vector<16x128xf32>
    %11 = arith.maximumf %8, %10 : vector<16x128xf32>
    %12 = arith.truncf %11 : vector<16x128xf32> to vector<16x128xbf16>
    %c1 = arith.constant 1 : index
    %c0_7 = arith.constant 0 : index
    %c0_8 = arith.constant 0 : index
    %13 = vector.load %arg2[%c1, %c0_7, %c0_8] : memref<5x128x128xbf16, #tpu.memory_space<vmem>>, vector<1x128x128xbf16>
    %14 = vector.shape_cast %13 : vector<1x128x128xbf16> to vector<128x128xbf16>
    %cst_9 = arith.constant dense<0.000000e+00> : vector<16x128xf32>
    %15 = tpu.matmul %12, %14, %cst_9 {dimension_numbers = #tpu.dot_dimension_numbers<[1], [0], [0], [1], [0, 0, 1, 1], [], []>} : vector<16x128xbf16>, vector<128x128xbf16>, vector<16x128xf32> -> vector<16x128xf32>
    %c1_10 = arith.constant 1 : index
    %c0_11 = arith.constant 0 : index
    %16 = vector.load %arg3[%c1_10, %c0_11] : memref<5x128xf32, #tpu.memory_space<vmem>>, vector<1x128xf32>
    %17 = vector.shape_cast %16 : vector<1x128xf32> to vector<128xf32>
    %18 = vector.shape_cast %17 : vector<128xf32> to vector<1x128xf32>
    %19 = vector.broadcast %18 : vector<1x128xf32> to vector<16x128xf32>
    %20 = arith.addf %15, %19 : vector<16x128xf32>
    %cst_12 = arith.constant 2.000000e-01 : f32
    %21 = vector.broadcast %cst_12 : f32 to vector<16x128xf32>
    %22 = arith.mulf %21, %20 : vector<16x128xf32>
    %23 = arith.maximumf %20, %22 : vector<16x128xf32>
    %24 = arith.truncf %23 : vector<16x128xf32> to vector<16x128xbf16>
    %c2 = arith.constant 2 : index
    %c0_13 = arith.constant 0 : index
    %c0_14 = arith.constant 0 : index
    %25 = vector.load %arg2[%c2, %c0_13, %c0_14] : memref<5x128x128xbf16, #tpu.memory_space<vmem>>, vector<1x128x128xbf16>
    %26 = vector.shape_cast %25 : vector<1x128x128xbf16> to vector<128x128xbf16>
    %cst_15 = arith.constant dense<0.000000e+00> : vector<16x128xf32>
    %27 = tpu.matmul %24, %26, %cst_15 {dimension_numbers = #tpu.dot_dimension_numbers<[1], [0], [0], [1], [0, 0, 1, 1], [], []>} : vector<16x128xbf16>, vector<128x128xbf16>, vector<16x128xf32> -> vector<16x128xf32>
    %c2_16 = arith.constant 2 : index
    %c0_17 = arith.constant 0 : index
    %28 = vector.load %arg3[%c2_16, %c0_17] : memref<5x128xf32, #tpu.memory_space<vmem>>, vector<1x128xf32>
    %29 = vector.shape_cast %28 : vector<1x128xf32> to vector<128xf32>
    %30 = vector.shape_cast %29 : vector<128xf32> to vector<1x128xf32>
    %31 = vector.broadcast %30 : vector<1x128xf32> to vector<16x128xf32>
    %32 = arith.addf %27, %31 : vector<16x128xf32>
    %cst_18 = arith.constant 2.000000e-01 : f32
    %33 = vector.broadcast %cst_18 : f32 to vector<16x128xf32>
    %34 = arith.mulf %33, %32 : vector<16x128xf32>
    %35 = arith.maximumf %32, %34 : vector<16x128xf32>
    %36 = arith.truncf %35 : vector<16x128xf32> to vector<16x128xbf16>
    %c3 = arith.constant 3 : index
    %c0_19 = arith.constant 0 : index
    %c0_20 = arith.constant 0 : index
    %37 = vector.load %arg2[%c3, %c0_19, %c0_20] : memref<5x128x128xbf16, #tpu.memory_space<vmem>>, vector<1x128x128xbf16>
    %38 = vector.shape_cast %37 : vector<1x128x128xbf16> to vector<128x128xbf16>
    %cst_21 = arith.constant dense<0.000000e+00> : vector<16x128xf32>
    %39 = tpu.matmul %36, %38, %cst_21 {dimension_numbers = #tpu.dot_dimension_numbers<[1], [0], [0], [1], [0, 0, 1, 1], [], []>} : vector<16x128xbf16>, vector<128x128xbf16>, vector<16x128xf32> -> vector<16x128xf32>
    %c3_22 = arith.constant 3 : index
    %c0_23 = arith.constant 0 : index
    %40 = vector.load %arg3[%c3_22, %c0_23] : memref<5x128xf32, #tpu.memory_space<vmem>>, vector<1x128xf32>
    %41 = vector.shape_cast %40 : vector<1x128xf32> to vector<128xf32>
    %42 = vector.shape_cast %41 : vector<128xf32> to vector<1x128xf32>
    %43 = vector.broadcast %42 : vector<1x128xf32> to vector<16x128xf32>
    %44 = arith.addf %39, %43 : vector<16x128xf32>
    %cst_24 = arith.constant 2.000000e-01 : f32
    %45 = vector.broadcast %cst_24 : f32 to vector<16x128xf32>
    %46 = arith.mulf %45, %44 : vector<16x128xf32>
    %47 = arith.maximumf %44, %46 : vector<16x128xf32>
    %48 = arith.truncf %47 : vector<16x128xf32> to vector<16x128xbf16>
    %c4 = arith.constant 4 : index
    %c0_25 = arith.constant 0 : index
    %c0_26 = arith.constant 0 : index
    %49 = vector.load %arg2[%c4, %c0_25, %c0_26] : memref<5x128x128xbf16, #tpu.memory_space<vmem>>, vector<1x128x128xbf16>
    %50 = vector.shape_cast %49 : vector<1x128x128xbf16> to vector<128x128xbf16>
    %cst_27 = arith.constant dense<0.000000e+00> : vector<16x128xf32>
    %51 = tpu.matmul %48, %50, %cst_27 {dimension_numbers = #tpu.dot_dimension_numbers<[1], [0], [0], [1], [0, 0, 1, 1], [], []>} : vector<16x128xbf16>, vector<128x128xbf16>, vector<16x128xf32> -> vector<16x128xf32>
    %c4_28 = arith.constant 4 : index
    %c0_29 = arith.constant 0 : index
    %52 = vector.load %arg3[%c4_28, %c0_29] : memref<5x128xf32, #tpu.memory_space<vmem>>, vector<1x128xf32>
    %53 = vector.shape_cast %52 : vector<1x128xf32> to vector<128xf32>
    %54 = vector.shape_cast %53 : vector<128xf32> to vector<1x128xf32>
    %55 = vector.broadcast %54 : vector<1x128xf32> to vector<16x128xf32>
    %56 = arith.addf %51, %55 : vector<16x128xf32>
    %cst_30 = arith.constant 2.000000e-01 : f32
    %57 = vector.broadcast %cst_30 : f32 to vector<16x128xf32>
    %58 = arith.mulf %57, %56 : vector<16x128xf32>
    %59 = arith.maximumf %56, %58 : vector<16x128xf32>
    %60 = arith.truncf %59 : vector<16x128xf32> to vector<16x128xbf16>
    %c0_31 = arith.constant 0 : index
    %c0_32 = arith.constant 0 : index
    %61 = vector.load %arg4[%c0_31, %c0_32] : memref<128x128xbf16, #tpu.memory_space<vmem>>, vector<128x128xbf16>
    %cst_33 = arith.constant dense<0.000000e+00> : vector<16x128xf32>
    %62 = tpu.matmul %60, %61, %cst_33 {dimension_numbers = #tpu.dot_dimension_numbers<[1], [0], [0], [1], [0, 0, 1, 1], [], []>} : vector<16x128xbf16>, vector<128x128xbf16>, vector<16x128xf32> -> vector<16x128xf32>
    %c0_34 = arith.constant 0 : index
    %c0_35 = arith.constant 0 : index
    %63 = vector.load %arg5[%c0_34, %c0_35] : memref<1x128xf32, #tpu.memory_space<vmem>>, vector<1x128xf32>
    %64 = vector.broadcast %63 : vector<1x128xf32> to vector<16x128xf32>
    %65 = arith.addf %62, %64 : vector<16x128xf32>
    %66 = arith.negf %65 : vector<16x128xf32>
    %67 = math.exp %66 : vector<16x128xf32>
    %cst_36 = arith.constant 1.000000e+00 : f32
    %68 = vector.broadcast %cst_36 : f32 to vector<16x128xf32>
    %69 = arith.addf %68, %67 : vector<16x128xf32>
    %70 = arith.divf %68, %69 : vector<16x128xf32>
    %c0_37 = arith.constant 0 : index
    %c0_38 = arith.constant 0 : index
    %71 = vector.load %arg6[%c0_37, %c0_38] : memref<16x128xf32, #tpu.memory_space<vmem>>, vector<16x128xf32>
    tpu.vector_store %arg6[%c0_37, %c0_38], %70 {strides = array<i32>} : memref<16x128xf32, #tpu.memory_space<vmem>>, vector<16x128xf32>,
    return
  }
  func.func @transform_0(%arg0: i32) -> (i32, i32) {
    %c0_i32 = arith.constant 0 : i32
    %c0_i32_0 = arith.constant 0 : i32
    return %arg0, %c0_i32 : i32, i32
  }
  func.func @transform_1(%arg0: i32) -> (i32, i32, i32) {
    %c0_i32 = arith.constant 0 : i32
    %c0_i32_0 = arith.constant 0 : i32
    %c0_i32_1 = arith.constant 0 : i32
    %c0_i32_2 = arith.constant 0 : i32
    return %c0_i32, %c0_i32_0, %c0_i32_1 : i32, i32, i32
  }
  func.func @transform_2(%arg0: i32) -> (i32, i32) {
    %c0_i32 = arith.constant 0 : i32
    %c0_i32_0 = arith.constant 0 : i32
    %c0_i32_1 = arith.constant 0 : i32
    return %c0_i32, %c0_i32_0 : i32, i32
  }
  func.func @transform_3(%arg0: i32) -> (i32, i32) {
    %c0_i32 = arith.constant 0 : i32
    %c0_i32_0 = arith.constant 0 : i32
    %c0_i32_1 = arith.constant 0 : i32
    return %c0_i32, %c0_i32_0 : i32, i32
  }
  func.func @transform_4(%arg0: i32) -> (i32, i32) {
    %c0_i32 = arith.constant 0 : i32
    %c0_i32_0 = arith.constant 0 : i32
    %c0_i32_1 = arith.constant 0 : i32
    return %c0_i32, %c0_i32_0 : i32, i32
  }
  func.func @transform_5(%arg0: i32) -> (i32, i32) {
    %c0_i32 = arith.constant 0 : i32
    %c0_i32_0 = arith.constant 0 : i32
    return %arg0, %c0_i32 : i32, i32
  }
}

</mosaic_0001>

<llo_original>
// kernel: synth_param_generator.1
$region0: #{synth_param_generator.1}
  #allocation0 [shape = 'u32[]', space=smem, size = 0x4, offset = 0x4, fixed_abs, tag = 'smem constant byte address 0x4 - core index']
  #allocation1 [shape = 'u32[144,128]{1,0:T(1,128)}', space=vmem, size = 0x12000, scoped, tag = 'internal scratch']
  %s0 = inlined_call_operand.vmem [shape: bf16[16,128], index: 0, kind: input, shape index: {}]
  %s1 = inlined_call_operand.vmem [shape: bf16[5,128,128], index: 1, kind: input, shape index: {}]
  %s2 = inlined_call_operand.vmem [shape: f32[5,128], index: 2, kind: input, shape index: {}]
  %s3 = inlined_call_operand.vmem [shape: bf16[128,128], index: 3, kind: input, shape index: {}]
  %s4 = inlined_call_operand.vmem [shape: f32[1,128], index: 4, kind: input, shape index: {}]
  %s5 = inlined_call_operand.vmem [shape: f32[16,128], index: 5, kind: output, shape index: {}]
  %s6 = sld [smem:[#allocation0]]
  $region30: #{synth_param_generator.1} parent=0
    _
  %s8 = ssub.s32 1, %s6
  %s9 = scalar_select 0, %s8, %s6
  // Predicated region
  $region2: #{synth_param_generator.1} parent=0 // pred_check
    _
  $region3: #{synth_param_generator.1} parent=0 // pred_check_branch
    %11 = sbr.rel (0) target = $region5
  $region4: #{synth_param_generator.1} parent=0 // pred_region
    _
  $region5: #{synth_param_generator.1} parent=0 // pred_fallthru
    _
  // Predicated region
  $region6: #{synth_param_generator.1} parent=0 // pred_check
    _
  $region7: #{synth_param_generator.1} parent=0 // pred_check_branch
    %13 = sbr.rel (0) target = $region9
  $region8: #{synth_param_generator.1} parent=0 // pred_region
    _
  $region9: #{synth_param_generator.1} parent=0 // pred_fallthru
    _
  // Predicated region
  $region10: #{synth_param_generator.1} parent=0 // pred_check
    _
  $region11: #{synth_param_generator.1} parent=0 // pred_check_branch
    %15 = sbr.rel (0) target = $region13
  $region12: #{synth_param_generator.1} parent=0 // pred_region
    _
  $region13: #{synth_param_generator.1} parent=0 // pred_fallthru
    _
  // Predicated region
  $region14: #{synth_param_generator.1} parent=0 // pred_check
    _
  $region15: #{synth_param_generator.1} parent=0 // pred_check_branch
    %17 = sbr.rel (0) target = $region17
  $region16: #{synth_param_generator.1} parent=0 // pred_region
    _
  $region17: #{synth_param_generator.1} parent=0 // pred_fallthru
    _
  // Predicated region
  $region18: #{synth_param_generator.1} parent=0 // pred_check
    _
  $region19: #{synth_param_generator.1} parent=0 // pred_check_branch
    %19 = sbr.rel (0) target = $region21
  $region20: #{synth_param_generator.1} parent=0 // pred_region
    _
  $region21: #{synth_param_generator.1} parent=0 // pred_fallthru
    _
  %v21 = vld [vmem:[%s0] sm:$0xf]
  %v22 = vld [vmem:[%s0 + $0x4] sm:$0xf]
  %v23 = vld [vmem:[%s1] sm:$0xf]
  %v24 = vld [vmem:[%s1 + $0x4] sm:$0xf]
  %v25 = vld [vmem:[%s1 + $0x8] sm:$0xf]
  %v26 = vld [vmem:[%s1 + $0xc] sm:$0xf]
  %v27 = vld [vmem:[%s1 + $0x10] sm:$0xf]
  %v28 = vld [vmem:[%s1 + $0x14] sm:$0xf]
  %v29 = vld [vmem:[%s1 + $0x18] sm:$0xf]
  %v30 = vld [vmem:[%s1 + $0x1c] sm:$0xf]
  %v31 = vld [vmem:[%s1 + $0x20] sm:$0xf]
  %v32 = vld [vmem:[%s1 + $0x24] sm:$0xf]
  %v33 = vld [vmem:[%s1 + $0x28] sm:$0xf]
  %v34 = vld [vmem:[%s1 + $0x2c] sm:$0xf]
  %v35 = vld [vmem:[%s1 + $0x30] sm:$0xf]
  %v36 = vld [vmem:[%s1 + $0x34] sm:$0xf]
  %v37 = vld [vmem:[%s1 + $0x38] sm:$0xf]
  %v38 = vld [vmem:[%s1 + $0x3c] sm:$0xf]
  %v39 = vld [vmem:[%s2] sm:$0x1]
  %v40 = vlaneseq
  %v41 = vshrl.u32 %v40, 7
  %v42 = vsub.s32 0, %v41
  %v43 = vrot.slane %v39, %v42
  %v46 = vunpack.c.l.b16 %v21
  %v47 = vunpack.c.l.b16 %v22
  %v48 = vpack.c.b16 %v47, %v46
  %v66 = vunpack.c.l.b16 %v23
  %v67 = vunpack.c.l.b16 %v24
  %v68 = vunpack.c.l.b16 %v25
  %v69 = vunpack.c.l.b16 %v26
  %v70 = vunpack.c.l.b16 %v27
  %v71 = vunpack.c.l.b16 %v28
  %v72 = vunpack.c.l.b16 %v29
  %v73 = vunpack.c.l.b16 %v30
  %v74 = vunpack.c.l.b16 %v31
  %v75 = vunpack.c.l.b16 %v32
  %v76 = vunpack.c.l.b16 %v33
  %v77 = vunpack.c.l.b16 %v34
  %v78 = vunpack.c.l.b16 %v35
  %v79 = vunpack.c.l.b16 %v36
  %v80 = vunpack.c.l.b16 %v37
  %v81 = vunpack.c.l.b16 %v38
  %v82 = vpack.c.b16 %v67, %v66
  %v83 = vpack.c.b16 %v69, %v68
  %v84 = vpack.c.b16 %v71, %v70
  %v85 = vpack.c.b16 %v73, %v72
  %v86 = vpack.c.b16 %v75, %v74
  %v87 = vpack.c.b16 %v77, %v76
  %v88 = vpack.c.b16 %v79, %v78
  %v89 = vpack.c.b16 %v81, %v80
  %98 = vmatprep.subr.bf16.mxu0 0
  %99 = vmatpush1.bf16.msra.mxu0 %v82
  %100 = vmatprep.subr.bf16.mxu0 0
  %101 = vmatpush1.bf16.msra.mxu0 %v83
  %102 = vmatprep.subr.bf16.mxu0 0
  %103 = vmatpush1.bf16.msra.mxu0 %v84
  %104 = vmatprep.subr.bf16.mxu0 0
  %105 = vmatpush1.bf16.msra.mxu0 %v85
  %106 = vmatprep.subr.bf16.mxu0 0
  %107 = vmatpush1.bf16.msra.mxu0 %v86
  %108 = vmatprep.subr.bf16.mxu0 0
  %109 = vmatpush1.bf16.msra.mxu0 %v87
  %110 = vmatprep.subr.bf16.mxu0 0
  %111 = vmatpush1.bf16.msra.mxu0 %v88
  %112 = vmatprep.subr.bf16.mxu0 0
  %113 = vmatpush1.bf16.msra.mxu0 %v89
  %114 = vmatprep.subr.bf16.mxu0 0
  %115 = vmatpush1.bf16.msra.mxu0 0
  %116 = vmatprep.subr.bf16.mxu0 0
  %117 = vmatpush1.bf16.msra.mxu0 0
  %118 = vmatprep.subr.bf16.mxu0 0
  %119 = vmatpush1.bf16.msra.mxu0 0
  %120 = vmatprep.subr.bf16.mxu0 0
  %121 = vmatpush1.bf16.msra.mxu0 0
  %122 = vmatprep.subr.bf16.mxu0 0
  %123 = vmatpush1.bf16.msra.mxu0 0
  %124 = vmatprep.subr.bf16.mxu0 0
  %125 = vmatpush1.bf16.msra.mxu0 0
  %126 = vmatprep.subr.bf16.mxu0 0
  %127 = vmatpush1.bf16.msra.mxu0 0
  %128 = vmatprep.subr.bf16.mxu0 0
  %129 = vmatpush1.bf16.msra.mxu0 0
  %130 = vmatprep.mubr.bf16.mxu0 0
  %131 = vmatmul.mubr.bf16.gmra.mrb[0].mxu0 %v48
  %v132 = vpop.f32.mrb[0].mxu0
  %v133 = vadd.f32 %v43, %v132
  %v134 = vpop.f32.mrb[0].mxu0
  %v135 = vpop.f32.mrb[0].mxu0
  %v136 = vadd.f32 %v43, %v135
  %v137 = vpop.f32.mrb[0].mxu0
  %138 = vdwg.mxu0
  %v139 = vmul.f32 %v133, 0.2
  %v140 = vmul.f32 %v136, 0.2
  %v141 = vmax.f32 %v133, %v139
  %v142 = vmax.f32 %v136, %v140
  %v143 = vpack.c.bf16 %v142, %v141
  %s144 = scalar_lea.vmem %s1, 64
  %v145 = vld [vmem:[%s144] sm:$0xf]
  %v146 = vld [vmem:[%s144 + $0x4] sm:$0xf]
  %v147 = vld [vmem:[%s144 + $0x8] sm:$0xf]
  %v148 = vld [vmem:[%s144 + $0xc] sm:$0xf]
  %v149 = vld [vmem:[%s144 + $0x10] sm:$0xf]
  %v150 = vld [vmem:[%s144 + $0x14] sm:$0xf]
  %v151 = vld [vmem:[%s144 + $0x18] sm:$0xf]
  %v152 = vld [vmem:[%s144 + $0x1c] sm:$0xf]
  %v153 = vld [vmem:[%s144 + $0x20] sm:$0xf]
  %v154 = vld [vmem:[%s144 + $0x24] sm:$0xf]
  %v155 = vld [vmem:[%s144 + $0x28] sm:$0xf]
  %v156 = vld [vmem:[%s144 + $0x2c] sm:$0xf]
  %v157 = vld [vmem:[%s144 + $0x30] sm:$0xf]
  %v158 = vld [vmem:[%s144 + $0x34] sm:$0xf]
  %v159 = vld [vmem:[%s144 + $0x38] sm:$0xf]
  %v160 = vld [vmem:[%s144 + $0x3c] sm:$0xf]
  %v161 = vld [vmem:[%s2 + $0x1] sm:$0x1]
  %v162 = vlaneseq
  %v163 = vshrl.u32 %v162, 7
  %v164 = vsub.s32 0, %v163
  %v165 = vrot.slane %v161, %v164
  %v182 = vunpack.c.l.b16 %v145
  %v183 = vunpack.c.l.b16 %v146
  %v184 = vunpack.c.l.b16 %v147
  %v185 = vunpack.c.l.b16 %v148
  %v186 = vunpack.c.l.b16 %v149
  %v187 = vunpack.c.l.b16 %v150
  %v188 = vunpack.c.l.b16 %v151
  %v189 = vunpack.c.l.b16 %v152
  %v190 = vunpack.c.l.b16 %v153
  %v191 = vunpack.c.l.b16 %v154
  %v192 = vunpack.c.l.b16 %v155
  %v193 = vunpack.c.l.b16 %v156
  %v194 = vunpack.c.l.b16 %v157
  %v195 = vunpack.c.l.b16 %v158
  %v196 = vunpack.c.l.b16 %v159
  %v197 = vunpack.c.l.b16 %v160
  %v198 = vpack.c.b16 %v183, %v182
  %v199 = vpack.c.b16 %v185, %v184
  %v200 = vpack.c.b16 %v187, %v186
  %v201 = vpack.c.b16 %v189, %v188
  %v202 = vpack.c.b16 %v191, %v190
  %v203 = vpack.c.b16 %v193, %v192
  %v204 = vpack.c.b16 %v195, %v194
  %v205 = vpack.c.b16 %v197, %v196
  %214 = vmatprep.subr.bf16.mxu0 0
  %215 = vmatpush1.bf16.msra.mxu0 %v198
  %216 = vmatprep.subr.bf16.mxu0 0
  %217 = vmatpush1.bf16.msra.mxu0 %v199
  %218 = vmatprep.subr.bf16.mxu0 0
  %219 = vmatpush1.bf16.msra.mxu0 %v200
  %220 = vmatprep.subr.bf16.mxu0 0
  %221 = vmatpush1.bf16.msra.mxu0 %v201
  %222 = vmatprep.subr.bf16.mxu0 0
  %223 = vmatpush1.bf16.msra.mxu0 %v202
  %224 = vmatprep.subr.bf16.mxu0 0
  %225 = vmatpush1.bf16.msra.mxu0 %v203
  %226 = vmatprep.subr.bf16.mxu0 0
  %227 = vmatpush1.bf16.msra.mxu0 %v204
  %228 = vmatprep.subr.bf16.mxu0 0
  %229 = vmatpush1.bf16.msra.mxu0 %v205
  %230 = vmatprep.subr.bf16.mxu0 0
  %231 = vmatpush1.bf16.msra.mxu0 0
  %232 = vmatprep.subr.bf16.mxu0 0
  %233 = vmatpush1.bf16.msra.mxu0 0
  %234 = vmatprep.subr.bf16.mxu0 0
  %235 = vmatpush1.bf16.msra.mxu0 0
  %236 = vmatprep.subr.bf16.mxu0 0
  %237 = vmatpush1.bf16.msra.mxu0 0
  %238 = vmatprep.subr.bf16.mxu0 0
  %239 = vmatpush1.bf16.msra.mxu0 0
  %240 = vmatprep.subr.bf16.mxu0 0
  %241 = vmatpush1.bf16.msra.mxu0 0
  %242 = vmatprep.subr.bf16.mxu0 0
  %243 = vmatpush1.bf16.msra.mxu0 0
  %244 = vmatprep.subr.bf16.mxu0 0
  %245 = vmatpush1.bf16.msra.mxu0 0
  %246 = vmatprep.mubr.bf16.mxu0 0
  %247 = vmatmul.mubr.bf16.gmra.mrb[0].mxu0 %v143
  %v248 = vpop.f32.mrb[0].mxu0
  %v249 = vadd.f32 %v165, %v248
  %v250 = vpop.f32.mrb[0].mxu0
  %v251 = vpop.f32.mrb[0].mxu0
  %v252 = vadd.f32 %v165, %v251
  %v253 = vpop.f32.mrb[0].mxu0
  %254 = vdwg.mxu0
  %v255 = vmul.f32 %v249, 0.2
  %v256 = vmul.f32 %v252, 0.2
  %v257 = vmax.f32 %v249, %v255
  %v258 = vmax.f32 %v252, %v256
  %v259 = vpack.c.bf16 %v258, %v257
  %s260 = scalar_lea.vmem %s1, 128
  %v261 = vld [vmem:[%s260] sm:$0xf]
  %v262 = vld [vmem:[%s260 + $0x4] sm:$0xf]
  %v263 = vld [vmem:[%s260 + $0x8] sm:$0xf]
  %v264 = vld [vmem:[%s260 + $0xc] sm:$0xf]
  %v265 = vld [vmem:[%s260 + $0x10] sm:$0xf]
  %v266 = vld [vmem:[%s260 + $0x14] sm:$0xf]
  %v267 = vld [vmem:[%s260 + $0x18] sm:$0xf]
  %v268 = vld [vmem:[%s260 + $0x1c] sm:$0xf]
  %v269 = vld [vmem:[%s260 + $0x20] sm:$0xf]
  %v270 = vld [vmem:[%s260 + $0x24] sm:$0xf]
  %v271 = vld [vmem:[%s260 + $0x28] sm:$0xf]
  %v272 = vld [vmem:[%s260 + $0x2c] sm:$0xf]
  %v273 = vld [vmem:[%s260 + $0x30] sm:$0xf]
  %v274 = vld [vmem:[%s260 + $0x34] sm:$0xf]
  %v275 = vld [vmem:[%s260 + $0x38] sm:$0xf]
  %v276 = vld [vmem:[%s260 + $0x3c] sm:$0xf]
  %v277 = vld [vmem:[%s2 + $0x2] sm:$0x1]
  %v278 = vlaneseq
  %v279 = vshrl.u32 %v278, 7
  %v280 = vsub.s32 0, %v279
  %v281 = vrot.slane %v277, %v280
  %v298 = vunpack.c.l.b16 %v261
  %v299 = vunpack.c.l.b16 %v262
  %v300 = vunpack.c.l.b16 %v263
  %v301 = vunpack.c.l.b16 %v264
  %v302 = vunpack.c.l.b16 %v265
  %v303 = vunpack.c.l.b16 %v266
  %v304 = vunpack.c.l.b16 %v267
  %v305 = vunpack.c.l.b16 %v268
  %v306 = vunpack.c.l.b16 %v269
  %v307 = vunpack.c.l.b16 %v270
  %v308 = vunpack.c.l.b16 %v271
  %v309 = vunpack.c.l.b16 %v272
  %v310 = vunpack.c.l.b16 %v273
  %v311 = vunpack.c.l.b16 %v274
  %v312 = vunpack.c.l.b16 %v275
  %v313 = vunpack.c.l.b16 %v276
  %v314 = vpack.c.b16 %v299, %v298
  %v315 = vpack.c.b16 %v301, %v300
  %v316 = vpack.c.b16 %v303, %v302
  %v317 = vpack.c.b16 %v305, %v304
  %v318 = vpack.c.b16 %v307, %v306
  %v319 = vpack.c.b16 %v309, %v308
  %v320 = vpack.c.b16 %v311, %v310
  %v321 = vpack.c.b16 %v313, %v312
  %330 = vmatprep.subr.bf16.mxu0 0
  %331 = vmatpush1.bf16.msra.mxu0 %v314
  %332 = vmatprep.subr.bf16.mxu0 0
  %333 = vmatpush1.bf16.msra.mxu0 %v315
  %334 = vmatprep.subr.bf16.mxu0 0
  %335 = vmatpush1.bf16.msra.mxu0 %v316
  %336 = vmatprep.subr.bf16.mxu0 0
  %337 = vmatpush1.bf16.msra.mxu0 %v317
  %338 = vmatprep.subr.bf16.mxu0 0
  %339 = vmatpush1.bf16.msra.mxu0 %v318
  %340 = vmatprep.subr.bf16.mxu0 0
  %341 = vmatpush1.bf16.msra.mxu0 %v319
  %342 = vmatprep.subr.bf16.mxu0 0
  %343 = vmatpush1.bf16.msra.mxu0 %v320
  %344 = vmatprep.subr.bf16.mxu0 0
  %345 = vmatpush1.bf16.msra.mxu0 %v321
  %346 = vmatprep.subr.bf16.mxu0 0
  %347 = vmatpush1.bf16.msra.mxu0 0
  %348 = vmatprep.subr.bf16.mxu0 0
  %349 = vmatpush1.bf16.msra.mxu0 0
  %350 = vmatprep.subr.bf16.mxu0 0
  %351 = vmatpush1.bf16.msra.mxu0 0
  %352 = vmatprep.subr.bf16.mxu0 0
  %353 = vmatpush1.bf16.msra.mxu0 0
  %354 = vmatprep.subr.bf16.mxu0 0
  %355 = vmatpush1.bf16.msra.mxu0 0
  %356 = vmatprep.subr.bf16.mxu0 0
  %357 = vmatpush1.bf16.msra.mxu0 0
  %358 = vmatprep.subr.bf16.mxu0 0
  %359 = vmatpush1.bf16.msra.mxu0 0
  %360 = vmatprep.subr.bf16.mxu0 0
  %361 = vmatpush1.bf16.msra.mxu0 0
  %362 = vmatprep.mubr.bf16.mxu0 0
  %363 = vmatmul.mubr.bf16.gmra.mrb[0].mxu0 %v259
  %v364 = vpop.f32.mrb[0].mxu0
  %v365 = vadd.f32 %v281, %v364
  %v366 = vpop.f32.mrb[0].mxu0
  %v367 = vpop.f32.mrb[0].mxu0
  %v368 = vadd.f32 %v281, %v367
  %v369 = vpop.f32.mrb[0].mxu0
  %370 = vdwg.mxu0
  %v371 = vmul.f32 %v365, 0.2
  %v372 = vmul.f32 %v368, 0.2
  %v373 = vmax.f32 %v365, %v371
  %v374 = vmax.f32 %v368, %v372
  %v375 = vpack.c.bf16 %v374, %v373
  %s376 = scalar_lea.vmem %s1, 192
  %v377 = vld [vmem:[%s376] sm:$0xf]
  %v378 = vld [vmem:[%s376 + $0x4] sm:$0xf]
  %v379 = vld [vmem:[%s376 + $0x8] sm:$0xf]
  %v380 = vld [vmem:[%s376 + $0xc] sm:$0xf]
  %v381 = vld [vmem:[%s376 + $0x10] sm:$0xf]
  %v382 = vld [vmem:[%s376 + $0x14] sm:$0xf]
  %v383 = vld [vmem:[%s376 + $0x18] sm:$0xf]
  %v384 = vld [vmem:[%s376 + $0x1c] sm:$0xf]
  %v385 = vld [vmem:[%s376 + $0x20] sm:$0xf]
  %v386 = vld [vmem:[%s376 + $0x24] sm:$0xf]
  %v387 = vld [vmem:[%s376 + $0x28] sm:$0xf]
  %v388 = vld [vmem:[%s376 + $0x2c] sm:$0xf]
  %v389 = vld [vmem:[%s376 + $0x30] sm:$0xf]
  %v390 = vld [vmem:[%s376 + $0x34] sm:$0xf]
  %v391 = vld [vmem:[%s376 + $0x38] sm:$0xf]
  %v392 = vld [vmem:[%s376 + $0x3c] sm:$0xf]
  %v393 = vld [vmem:[%s2 + $0x3] sm:$0x1]
  %v394 = vlaneseq
  %v395 = vshrl.u32 %v394, 7
  %v396 = vsub.s32 0, %v395
  %v397 = vrot.slane %v393, %v396
  %v414 = vunpack.c.l.b16 %v377
  %v415 = vunpack.c.l.b16 %v378
  %v416 = vunpack.c.l.b16 %v379
  %v417 = vunpack.c.l.b16 %v380
  %v418 = vunpack.c.l.b16 %v381
  %v419 = vunpack.c.l.b16 %v382
  %v420 = vunpack.c.l.b16 %v383
  %v421 = vunpack.c.l.b16 %v384
  %v422 = vunpack.c.l.b16 %v385
  %v423 = vunpack.c.l.b16 %v386
  %v424 = vunpack.c.l.b16 %v387
  %v425 = vunpack.c.l.b16 %v388
  %v426 = vunpack.c.l.b16 %v389
  %v427 = vunpack.c.l.b16 %v390
  %v428 = vunpack.c.l.b16 %v391
  %v429 = vunpack.c.l.b16 %v392
  %v430 = vpack.c.b16 %v415, %v414
  %v431 = vpack.c.b16 %v417, %v416
  %v432 = vpack.c.b16 %v419, %v418
  %v433 = vpack.c.b16 %v421, %v420
  %v434 = vpack.c.b16 %v423, %v422
  %v435 = vpack.c.b16 %v425, %v424
  %v436 = vpack.c.b16 %v427, %v426
  %v437 = vpack.c.b16 %v429, %v428
  %446 = vmatprep.subr.bf16.mxu0 0
  %447 = vmatpush1.bf16.msra.mxu0 %v430
  %448 = vmatprep.subr.bf16.mxu0 0
  %449 = vmatpush1.bf16.msra.mxu0 %v431
  %450 = vmatprep.subr.bf16.mxu0 0
  %451 = vmatpush1.bf16.msra.mxu0 %v432
  %452 = vmatprep.subr.bf16.mxu0 0
  %453 = vmatpush1.bf16.msra.mxu0 %v433
  %454 = vmatprep.subr.bf16.mxu0 0
  %455 = vmatpush1.bf16.msra.mxu0 %v434
  %456 = vmatprep.subr.bf16.mxu0 0
  %457 = vmatpush1.bf16.msra.mxu0 %v435
  %458 = vmatprep.subr.bf16.mxu0 0
  %459 = vmatpush1.bf16.msra.mxu0 %v436
  %460 = vmatprep.subr.bf16.mxu0 0
  %461 = vmatpush1.bf16.msra.mxu0 %v437
  %462 = vmatprep.subr.bf16.mxu0 0
  %463 = vmatpush1.bf16.msra.mxu0 0
  %464 = vmatprep.subr.bf16.mxu0 0
  %465 = vmatpush1.bf16.msra.mxu0 0
  %466 = vmatprep.subr.bf16.mxu0 0
  %467 = vmatpush1.bf16.msra.mxu0 0
  %468 = vmatprep.subr.bf16.mxu0 0
  %469 = vmatpush1.bf16.msra.mxu0 0
  %470 = vmatprep.subr.bf16.mxu0 0
  %471 = vmatpush1.bf16.msra.mxu0 0
  %472 = vmatprep.subr.bf16.mxu0 0
  %473 = vmatpush1.bf16.msra.mxu0 0
  %474 = vmatprep.subr.bf16.mxu0 0
  %475 = vmatpush1.bf16.msra.mxu0 0
  %476 = vmatprep.subr.bf16.mxu0 0
  %477 = vmatpush1.bf16.msra.mxu0 0
  %478 = vmatprep.mubr.bf16.mxu0 0
  %479 = vmatmul.mubr.bf16.gmra.mrb[0].mxu0 %v375
  %v480 = vpop.f32.mrb[0].mxu0
  %v481 = vadd.f32 %v397, %v480
  %v482 = vpop.f32.mrb[0].mxu0
  %v483 = vpop.f32.mrb[0].mxu0
  %v484 = vadd.f32 %v397, %v483
  %v485 = vpop.f32.mrb[0].mxu0
  %486 = vdwg.mxu0
  %v487 = vmul.f32 %v481, 0.2
  %v488 = vmul.f32 %v484, 0.2
  %v489 = vmax.f32 %v481, %v487
  %v490 = vmax.f32 %v484, %v488
  %v491 = vpack.c.bf16 %v490, %v489
  %s492 = scalar_lea.vmem %s1, 256
  %v493 = vld [vmem:[%s492] sm:$0xf]
  %v494 = vld [vmem:[%s492 + $0x4] sm:$0xf]
  %v495 = vld [vmem:[%s492 + $0x8] sm:$0xf]
  %v496 = vld [vmem:[%s492 + $0xc] sm:$0xf]
  %v497 = vld [vmem:[%s492 + $0x10] sm:$0xf]
  %v498 = vld [vmem:[%s492 + $0x14] sm:$0xf]
  %v499 = vld [vmem:[%s492 + $0x18] sm:$0xf]
  %v500 = vld [vmem:[%s492 + $0x1c] sm:$0xf]
  %v501 = vld [vmem:[%s492 + $0x20] sm:$0xf]
  %v502 = vld [vmem:[%s492 + $0x24] sm:$0xf]
  %v503 = vld [vmem:[%s492 + $0x28] sm:$0xf]
  %v504 = vld [vmem:[%s492 + $0x2c] sm:$0xf]
  %v505 = vld [vmem:[%s492 + $0x30] sm:$0xf]
  %v506 = vld [vmem:[%s492 + $0x34] sm:$0xf]
  %v507 = vld [vmem:[%s492 + $0x38] sm:$0xf]
  %v508 = vld [vmem:[%s492 + $0x3c] sm:$0xf]
  %v509 = vld [vmem:[%s2 + $0x4] sm:$0x1]
  %v510 = vlaneseq
  %v511 = vshrl.u32 %v510, 7
  %v512 = vsub.s32 0, %v511
  %v513 = vrot.slane %v509, %v512
  %v530 = vunpack.c.l.b16 %v493
  %v531 = vunpack.c.l.b16 %v494
  %v532 = vunpack.c.l.b16 %v495
  %v533 = vunpack.c.l.b16 %v496
  %v534 = vunpack.c.l.b16 %v497
  %v535 = vunpack.c.l.b16 %v498
  %v536 = vunpack.c.l.b16 %v499
  %v537 = vunpack.c.l.b16 %v500
  %v538 = vunpack.c.l.b16 %v501
  %v539 = vunpack.c.l.b16 %v502
  %v540 = vunpack.c.l.b16 %v503
  %v541 = vunpack.c.l.b16 %v504
  %v542 = vunpack.c.l.b16 %v505
  %v543 = vunpack.c.l.b16 %v506
  %v544 = vunpack.c.l.b16 %v507
  %v545 = vunpack.c.l.b16 %v508
  %v546 = vpack.c.b16 %v531, %v530
  %v547 = vpack.c.b16 %v533, %v532
  %v548 = vpack.c.b16 %v535, %v534
  %v549 = vpack.c.b16 %v537, %v536
  %v550 = vpack.c.b16 %v539, %v538
  %v551 = vpack.c.b16 %v541, %v540
  %v552 = vpack.c.b16 %v543, %v542
  %v553 = vpack.c.b16 %v545, %v544
  %562 = vmatprep.subr.bf16.mxu0 0
  %563 = vmatpush1.bf16.msra.mxu0 %v546
  %564 = vmatprep.subr.bf16.mxu0 0
  %565 = vmatpush1.bf16.msra.mxu0 %v547
  %566 = vmatprep.subr.bf16.mxu0 0
  %567 = vmatpush1.bf16.msra.mxu0 %v548
  %568 = vmatprep.subr.bf16.mxu0 0
  %569 = vmatpush1.bf16.msra.mxu0 %v549
  %570 = vmatprep.subr.bf16.mxu0 0
  %571 = vmatpush1.bf16.msra.mxu0 %v550
  %572 = vmatprep.subr.bf16.mxu0 0
  %573 = vmatpush1.bf16.msra.mxu0 %v551
  %574 = vmatprep.subr.bf16.mxu0 0
  %575 = vmatpush1.bf16.msra.mxu0 %v552
  %576 = vmatprep.subr.bf16.mxu0 0
  %577 = vmatpush1.bf16.msra.mxu0 %v553
  %578 = vmatprep.subr.bf16.mxu0 0
  %579 = vmatpush1.bf16.msra.mxu0 0
  %580 = vmatprep.subr.bf16.mxu0 0
  %581 = vmatpush1.bf16.msra.mxu0 0
  %582 = vmatprep.subr.bf16.mxu0 0
  %583 = vmatpush1.bf16.msra.mxu0 0
  %584 = vmatprep.subr.bf16.mxu0 0
  %585 = vmatpush1.bf16.msra.mxu0 0
  %586 = vmatprep.subr.bf16.mxu0 0
  %587 = vmatpush1.bf16.msra.mxu0 0
  %588 = vmatprep.subr.bf16.mxu0 0
  %589 = vmatpush1.bf16.msra.mxu0 0
  %590 = vmatprep.subr.bf16.mxu0 0
  %591 = vmatpush1.bf16.msra.mxu0 0
  %592 = vmatprep.subr.bf16.mxu0 0
  %593 = vmatpush1.bf16.msra.mxu0 0
  %594 = vmatprep.mubr.bf16.mxu0 0
  %595 = vmatmul.mubr.bf16.gmra.mrb[0].mxu0 %v491
  %v596 = vpop.f32.mrb[0].mxu0
  %v597 = vadd.f32 %v513, %v596
  %v598 = vpop.f32.mrb[0].mxu0
  %v599 = vpop.f32.mrb[0].mxu0
  %v600 = vadd.f32 %v513, %v599
  %v601 = vpop.f32.mrb[0].mxu0
  %602 = vdwg.mxu0
  %v603 = vmul.f32 %v597, 0.2
  %v604 = vmul.f32 %v600, 0.2
  %v605 = vmax.f32 %v597, %v603
  %v606 = vmax.f32 %v600, %v604
  %v607 = vpack.c.bf16 %v606, %v605
  %v608 = vld [vmem:[%s3] sm:$0xf]
  %v609 = vld [vmem:[%s3 + $0x4] sm:$0xf]
  %v610 = vld [vmem:[%s3 + $0x8] sm:$0xf]
  %v611 = vld [vmem:[%s3 + $0xc] sm:$0xf]
  %v612 = vld [vmem:[%s3 + $0x10] sm:$0xf]
  %v613 = vld [vmem:[%s3 + $0x14] sm:$0xf]
  %v614 = vld [vmem:[%s3 + $0x18] sm:$0xf]
  %v615 = vld [vmem:[%s3 + $0x1c] sm:$0xf]
  %v616 = vld [vmem:[%s3 + $0x20] sm:$0xf]
  %v617 = vld [vmem:[%s3 + $0x24] sm:$0xf]
  %v618 = vld [vmem:[%s3 + $0x28] sm:$0xf]
  %v619 = vld [vmem:[%s3 + $0x2c] sm:$0xf]
  %v620 = vld [vmem:[%s3 + $0x30] sm:$0xf]
  %v621 = vld [vmem:[%s3 + $0x34] sm:$0xf]
  %v622 = vld [vmem:[%s3 + $0x38] sm:$0xf]
  %v623 = vld [vmem:[%s3 + $0x3c] sm:$0xf]
  %v624 = vld [vmem:[%s4] sm:$0x1]
  %v626 = vlaneseq
  %v627 = vshrl.u32 %v626, 7
  %v628 = vsub.s32 0, %v627
  %v629 = vrot.slane %v624, %v628
  %v647 = vunpack.c.l.b16 %v608
  %v648 = vunpack.c.l.b16 %v609
  %v649 = vunpack.c.l.b16 %v610
  %v650 = vunpack.c.l.b16 %v611
  %v651 = vunpack.c.l.b16 %v612
  %v652 = vunpack.c.l.b16 %v613
  %v653 = vunpack.c.l.b16 %v614
  %v654 = vunpack.c.l.b16 %v615
  %v655 = vunpack.c.l.b16 %v616
  %v656 = vunpack.c.l.b16 %v617
  %v657 = vunpack.c.l.b16 %v618
  %v658 = vunpack.c.l.b16 %v619
  %v659 = vunpack.c.l.b16 %v620
  %v660 = vunpack.c.l.b16 %v621
  %v661 = vunpack.c.l.b16 %v622
  %v662 = vunpack.c.l.b16 %v623
  %v663 = vpack.c.b16 %v648, %v647
  %v664 = vpack.c.b16 %v650, %v649
  %v665 = vpack.c.b16 %v652, %v651
  %v666 = vpack.c.b16 %v654, %v653
  %v667 = vpack.c.b16 %v656, %v655
  %v668 = vpack.c.b16 %v658, %v657
  %v669 = vpack.c.b16 %v660, %v659
  %v670 = vpack.c.b16 %v662, %v661
  %679 = vmatprep.subr.bf16.mxu0 0
  %680 = vmatpush1.bf16.msra.mxu0 %v663
  %681 = vmatprep.subr.bf16.mxu0 0
  %682 = vmatpush1.bf16.msra.mxu0 %v664
  %683 = vmatprep.subr.bf16.mxu0 0
  %684 = vmatpush1.bf16.msra.mxu0 %v665
  %685 = vmatprep.subr.bf16.mxu0 0
  %686 = vmatpush1.bf16.msra.mxu0 %v666
  %687 = vmatprep.subr.bf16.mxu0 0
  %688 = vmatpush1.bf16.msra.mxu0 %v667
  %689 = vmatprep.subr.bf16.mxu0 0
  %690 = vmatpush1.bf16.msra.mxu0 %v668
  %691 = vmatprep.subr.bf16.mxu0 0
  %692 = vmatpush1.bf16.msra.mxu0 %v669
  %693 = vmatprep.subr.bf16.mxu0 0
  %694 = vmatpush1.bf16.msra.mxu0 %v670
  %695 = vmatprep.subr.bf16.mxu0 0
  %696 = vmatpush1.bf16.msra.mxu0 0
  %697 = vmatprep.subr.bf16.mxu0 0
  %698 = vmatpush1.bf16.msra.mxu0 0
  %699 = vmatprep.subr.bf16.mxu0 0
  %700 = vmatpush1.bf16.msra.mxu0 0
  %701 = vmatprep.subr.bf16.mxu0 0
  %702 = vmatpush1.bf16.msra.mxu0 0
  %703 = vmatprep.subr.bf16.mxu0 0
  %704 = vmatpush1.bf16.msra.mxu0 0
  %705 = vmatprep.subr.bf16.mxu0 0
  %706 = vmatpush1.bf16.msra.mxu0 0
  %707 = vmatprep.subr.bf16.mxu0 0
  %708 = vmatpush1.bf16.msra.mxu0 0
  %709 = vmatprep.subr.bf16.mxu0 0
  %710 = vmatpush1.bf16.msra.mxu0 0
  %711 = vmatprep.mubr.bf16.mxu0 0
  %712 = vmatmul.mubr.bf16.gmra.mrb[0].mxu0 %v607
  %v713 = vpop.f32.mrb[0].mxu0
  %v714 = vadd.f32 %v629, %v713
  %v715 = vpop.f32.mrb[0].mxu0
  %v716 = vpop.f32.mrb[0].mxu0
  %v717 = vadd.f32 %v629, %v716
  %v718 = vpop.f32.mrb[0].mxu0
  %719 = vdwg.mxu0
  %v720 = vxor.u32 %v714, 2147483648
  %v721 = vxor.u32 %v717, 2147483648
  %v722 = vmul.f32 %v720, 1.442695
  %v723 = vpow.pop %v722
  %v724 = vmul.f32 %v721, 1.442695
  %v725 = vpow.pop %v724
  %v726 = vadd.f32 %v723, 1.0
  %v727 = vadd.f32 %v725, 1.0
  %v728 = vrcp.pop %v726
  %v729 = vmul.f32 1.0, %v728
  %v730 = vrcp.pop %v727
  %v731 = vmul.f32 1.0, %v730
  %732 = vst [vmem:[%s5] sm:$0xff] %v729
  %733 = vst [vmem:[%s5 + $0x8] sm:$0xff] %v731
  // Predicated region
  $region22: #{synth_param_generator.1} parent=0 // pred_check
    _
  $region23: #{synth_param_generator.1} parent=0 // pred_check_branch
    %735 = sbr.rel (0) target = $region25
  $region24: #{synth_param_generator.1} parent=0 // pred_region
    _
  $region25: #{synth_param_generator.1} parent=0 // pred_fallthru
    _
  // Predicated region
  $region26: #{synth_param_generator.1} parent=0 // pred_check
    _
  $region27: #{synth_param_generator.1} parent=0 // pred_check_branch
    %737 = sbr.rel (0) target = $region29
  $region28: #{synth_param_generator.1} parent=0 // pred_region
    _
  $region29: #{synth_param_generator.1} parent=0 // pred_fallthru
    _

</llo_original>
